<compile_context>
chip_gen: v7x
topology: tpu7x:2x2x1
jax: 0.10.0
libtpu: 0.0.40
codegen_flags: <defaults>
</compile_context>

<pallas_src>
import functools

import jax
import jax.numpy as jnp
from jax import lax
from jax.experimental import pallas as pl
from jax.experimental.pallas import tpu as pltpu

LANES = 128
SUBLANES = 8
CHUNK_ROWS = 256                      # strip-mine depth inside each grid block
TARGET_TILE_BYTES = 4 * 1024 * 1024   # HBM bytes moved per operand per grid step
VMEM_LIMIT_BYTES = 48 * 1024 * 1024   # <= ~56 MiB so it also fits v7x's 64 MiB VMEM


def _round_up(x, m):
    return ((x + m - 1) // m) * m


def _sq_diff_partial_kernel(x_ref, y_ref, out_ref, *, valid_rows, tile_rows, chunk,
                            d, needs_mask):
    """Per-grid-block partial sums of (x - y)^2, folded to a single (8, d) tile.

    The block is strip-mined in `chunk`-row slabs (lax.fori_loop) so the f32 upcast,
    diff and square stay chunk-sized, and the running partial lives in one (8, d)
    f32 carry.  Only the ragged final block pays for the row mask.
    """
    i = pl.program_id(0)
    nchunks = tile_rows // chunk

    def block_sum(masked):
        if masked:
            local_rows = lax.broadcasted_iota(jnp.int32, (chunk, d), 0)
            row_base = i * tile_rows

        def body(s, acc):
            r0 = pl.multiple_of(s * chunk, chunk)
            xs = x_ref[pl.ds(r0, chunk), :].astype(jnp.float32)
            ys = y_ref[pl.ds(r0, chunk), :].astype(jnp.float32)
            diff = xs - ys
            sq = diff * diff
            if masked:
                row_ids = row_base + s * chunk + local_rows
                sq = jnp.where(row_ids < valid_rows, sq, 0.0)
            return acc + jnp.sum(sq.reshape(chunk // SUBLANES, SUBLANES, d), axis=0)

        return lax.fori_loop(0, nchunks, body,
                             jnp.zeros((SUBLANES, d), jnp.float32))

    if needs_mask:
        last = pl.num_programs(0) - 1

        @pl.when(i == last)       # only the ragged final block pays for the mask
        def _():
            out_ref[...] = block_sum(True)

        @pl.when(i != last)
        def _():
            out_ref[...] = block_sum(False)
    else:
        out_ref[...] = block_sum(False)


def mse_loss_pallas(x, y, *, tile_rows=None):
    """Mean squared error over all elements, matching torch.nn.MSELoss() defaults."""
    assert x.shape == y.shape, "MSELoss requires matching shapes (no broadcasting here)"
    n_elems = x.size
    if n_elems == 0:
        # torch.nn.MSELoss on empty inputs yields NaN (0/0).
        return jnp.float32(jnp.nan)

    itemsize = max(jnp.dtype(x.dtype).itemsize, jnp.dtype(y.dtype).itemsize)

    # Build a zero-copy 2-D view of each operand.
    if n_elems % LANES == 0:
        # Lane-dense flat view — a free reshape.
        d = LANES
        x2d = x.reshape(-1, LANES)
        y2d = y.reshape(-1, LANES)
    else:
        # Fold all leading dims (also a free reshape); original last dim rides the lanes.
        d = x.shape[-1] if x.ndim >= 1 else 1
        if SUBLANES * _round_up(d, LANES) * itemsize <= TARGET_TILE_BYTES:
            x2d = x.reshape(-1, d)
            y2d = y.reshape(-1, d)
        else:
            # Degenerate shape (misaligned count AND huge last dim): pad the flat view to
            # a 128-lane boundary (one extra HBM copy) rather than risk a VMEM-oversized
            # block.  Zero pads contribute 0 to the squared-diff sum.
            d = LANES
            padded = _round_up(n_elems, LANES)
            x2d = jnp.pad(x.reshape(-1), (0, padded - n_elems)).reshape(-1, LANES)
            y2d = jnp.pad(y.reshape(-1), (0, padded - n_elems)).reshape(-1, LANES)

    rows = x2d.shape[0]
    d = x2d.shape[1]
    d_padded = _round_up(d, LANES)

    # Dtype-aware tile: ~TARGET_TILE_BYTES of input per operand per grid step.
    if tile_rows is None:
        tile_rows = TARGET_TILE_BYTES // (d_padded * itemsize)
    tile_rows = max(SUBLANES, (int(tile_rows) // SUBLANES) * SUBLANES)
    tile_rows = min(tile_rows, _round_up(rows, SUBLANES))
    chunk = min(CHUNK_ROWS, tile_rows)
    tile_rows = (tile_rows // chunk) * chunk      # chunk | tile_rows (both multiples of 8)

    num_blocks = pl.cdiv(rows, tile_rows)
    needs_mask = (rows % tile_rows) != 0          # only the last block can be ragged

    kernel = functools.partial(
        _sq_diff_partial_kernel,
        valid_rows=rows, tile_rows=tile_rows, chunk=chunk, d=d,
        needs_mask=needs_mask)

    out_bytes = num_blocks * SUBLANES * d * 4
    cost = pl.CostEstimate(
        flops=3 * n_elems,                        # sub, mul, add per element
        transcendentals=0,
        bytes_accessed=2 * n_elems * itemsize + out_bytes)

    partials = pl.pallas_call(
        kernel,
        out_shape=jax.ShapeDtypeStruct((num_blocks * SUBLANES, d), jnp.float32),
        grid_spec=pltpu.PrefetchScalarGridSpec(
            num_scalar_prefetch=0,
            grid=(num_blocks,),
            in_specs=[
                pl.BlockSpec((tile_rows, d), lambda i: (i, 0)),
                pl.BlockSpec((tile_rows, d), lambda i: (i, 0)),
            ],
            # Independent lane-dense (8, d) partial-sum block per grid step — no carried
            # accumulator, so the grid axis stays truly parallel (megacore on v7x).
            out_specs=pl.BlockSpec((SUBLANES, d), lambda i: (i, 0)),
        ),
        compiler_params=pltpu.CompilerParams(
            dimension_semantics=("parallel",),
            vmem_limit_bytes=VMEM_LIMIT_BYTES,
        ),
        cost_estimate=cost,
    )(x2d, y2d)

    # One tiny final reduction of the per-block partial sums.
    return jnp.sum(partials) / jnp.float32(n_elems)


def recon_loss(mel, mel_target):
    """Pallas equivalent of ReconLoss.forward: returns {'loss/mel': mse(mel, mel_target)}."""
    return {"loss/mel": mse_loss_pallas(mel, mel_target)}


if __name__ == "__main__":
    key = jax.random.PRNGKey(0)
    k1, k2, k3, k4 = jax.random.split(key, 4)

    # Mel-spectrogram-like inputs: [batch=2, n_mels=80, frames=64] (128-aligned path).
    mel = jax.random.normal(k1, (2, 80, 64), dtype=jnp.float32)
    mel_target = jax.random.normal(k2, (2, 80, 64), dtype=jnp.float32)

    loss = jax.block_until_ready(recon_loss(mel, mel_target)["loss/mel"])
    ref = jnp.mean((mel - mel_target) ** 2)
    assert jnp.allclose(loss, ref, rtol=1e-5, atol=1e-6), (loss, ref)

    # Misaligned element count (exercises the zero-copy generic 2-D path + row mask).
    a = jax.random.normal(k3, (2, 13, 50), dtype=jnp.float32)
    b = jax.random.normal(k4, (2, 13, 50), dtype=jnp.float32)
    loss2 = jax.block_until_ready(mse_loss_pallas(a, b))
    ref2 = jnp.mean((a - b) ** 2)
    assert jnp.allclose(loss2, ref2, rtol=1e-5, atol=1e-6), (loss2, ref2)

    # Multi-block grid with a ragged, pl.when-gated last block (small tile forces >1 step).
    c = jax.random.normal(k1, (3, 40, 30), dtype=jnp.float32)
    d = jax.random.normal(k2, (3, 40, 30), dtype=jnp.float32)
    loss3 = jax.block_until_ready(mse_loss_pallas(c, d, tile_rows=32))
    ref3 = jnp.mean((c - d) ** 2)
    assert jnp.allclose(loss3, ref3, rtol=1e-5, atol=1e-6), (loss3, ref3)

    # bf16 inputs stream in their native dtype; the kernel upcasts to f32 internally.
    mel_bf = mel.astype(jnp.bfloat16)
    tgt_bf = mel_target.astype(jnp.bfloat16)
    loss4 = jax.block_until_ready(mse_loss_pallas(mel_bf, tgt_bf))
    ref4 = jnp.mean((mel_bf.astype(jnp.float32) - tgt_bf.astype(jnp.float32)) ** 2)
    assert jnp.allclose(loss4, ref4, rtol=1e-5, atol=1e-6), (loss4, ref4)

    # Larger aligned input: multi-block parallel grid + strip-mined chunk loop + masked tail.
    e = jax.random.normal(k3, (4, 520, 64), dtype=jnp.float32)
    f = jax.random.normal(k4, (4, 520, 64), dtype=jnp.float32)
    loss5 = jax.block_until_ready(mse_loss_pallas(e, f, tile_rows=512))
    ref5 = jnp.mean((e - f) ** 2)
    assert jnp.allclose(loss5, ref5, rtol=1e-4, atol=1e-6), (loss5, ref5)

    print("KERNEL_OK")
</pallas_src>

<mosaic_0001>
module attributes {stable_mosaic.version = 11 : i64} {
  func.func @_sq_diff_partial_kernel(%arg0: i32, %arg1: memref<80x128xf32, #tpu.memory_space<vmem>>, %arg2: memref<80x128xf32, #tpu.memory_space<vmem>>, %arg3: memref<8x128xf32, #tpu.memory_space<vmem>>) attributes {dimension_semantics = [#tpu.dimension_semantics<parallel>], iteration_bounds = array<i64: 1>, scalar_prefetch = 0 : i64, scratch_operands = 0 : i64, tpu.core_type = #tpu.core_type<tc>, window_params = [{transform_indices = @transform_0, window_bounds = array<i64: 80, 128>}, {transform_indices = @transform_1, window_bounds = array<i64: 80, 128>}, {transform_indices = @transform_2, window_bounds = array<i64: 8, 128>}]} {
    %cst = arith.constant 0.000000e+00 : f32
    %0 = vector.broadcast %cst : f32 to vector<8x128xf32>
    %c0_i32 = arith.constant 0 : i32
    %c80_i32 = arith.constant 80 : i32
    %1 = arith.muli %c0_i32, %c80_i32 : i32
    %2 = tpu.assume_multiple %1, 80 : i32
    %3 = arith.index_cast %2 : i32 to index
    %c0 = arith.constant 0 : index
    %4 = vector.load %arg1[%3, %c0] : memref<80x128xf32, #tpu.memory_space<vmem>>, vector<80x128xf32>
    %5 = arith.index_cast %2 : i32 to index
    %c0_0 = arith.constant 0 : index
    %6 = vector.load %arg2[%5, %c0_0] : memref<80x128xf32, #tpu.memory_space<vmem>>, vector<80x128xf32>
    %7 = arith.subf %4, %6 : vector<80x128xf32>
    %8 = arith.mulf %7, %7 : vector<80x128xf32>
    %9 = vector.shape_cast %8 : vector<80x128xf32> to vector<10x8x128xf32>
    %cst_1 = arith.constant dense<0.000000e+00> : vector<8x128xf32>
    %10 = vector.multi_reduction <add>, %9, %cst_1 [0] : vector<10x8x128xf32> to vector<8x128xf32>
    %11 = arith.addf %0, %10 : vector<8x128xf32>
    %c1_i32 = arith.constant 1 : i32
    %c0_2 = arith.constant 0 : index
    %c0_3 = arith.constant 0 : index
    %12 = vector.load %arg3[%c0_2, %c0_3] : memref<8x128xf32, #tpu.memory_space<vmem>>, vector<8x128xf32>
    tpu.vector_store %arg3[%c0_2, %c0_3], %11 {strides = array<i32>} : memref<8x128xf32, #tpu.memory_space<vmem>>, vector<8x128xf32>,
    return
  }
  func.func @transform_0(%arg0: i32) -> (i32, i32) {
    %c0_i32 = arith.constant 0 : i32
    %c0_i32_0 = arith.constant 0 : i32
    return %arg0, %c0_i32 : i32, i32
  }
  func.func @transform_1(%arg0: i32) -> (i32, i32) {
    %c0_i32 = arith.constant 0 : i32
    %c0_i32_0 = arith.constant 0 : i32
    return %arg0, %c0_i32 : i32, i32
  }
  func.func @transform_2(%arg0: i32) -> (i32, i32) {
    %c0_i32 = arith.constant 0 : i32
    %c0_i32_0 = arith.constant 0 : i32
    return %arg0, %c0_i32 : i32, i32
  }
}

</mosaic_0001>

<llo_original>
// kernel: tpu_custom_call.1
$region0: #{tpu_custom_call.1}
  #allocation0 [shape = 'u32[]', space=smem, size = 0x4, offset = 0x4, fixed_abs, tag = 'smem constant byte address 0x4 - core index']
  #allocation1 [shape = 'u32[144,128]{1,0:T(1,128)}', space=vmem, size = 0x12000, scoped, tag = 'internal scratch']
  %s0 = inlined_call_operand.hbm [shape: f32[80,128], index: 0, kind: input, shape index: {}]
  %s1 = inlined_call_operand.hbm [shape: f32[80,128], index: 1, kind: input, shape index: {}]
  %s2 = inlined_call_operand.hbm [shape: f32[8,128], index: 2, kind: output, shape index: {}]
  %s3 = sld [smem:[#allocation0]]
  $region26: #{tpu_custom_call.1} parent=0
    _
  %s5 = ssub.s32 1, %s3
  %s6 = scalar_select 0, %s5, %s3
  $region1: #{tpu_custom_call.1} parent=0
    #allocation2 [shape = 'u8[40960]{0}', space=vmem, size = 0xa000, scoped, tag = 'input window, operand 0, single buffered']
    #allocation3 [shape = 's32[1]{0}', space=sflag, size = 0x4, scoped, tag = 'scoped memory for tpu_custom_call.1']
    #allocation4 [shape = 's32[1]{0}', space=sflag, size = 0x4, scoped, tag = 'scoped memory for tpu_custom_call.1']
    #allocation5 [shape = 'u8[40960]{0}', space=vmem, size = 0xa000, scoped, tag = 'input window, operand 1, single buffered']
    #allocation6 [shape = 's32[1]{0}', space=sflag, size = 0x4, scoped, tag = 'scoped memory for tpu_custom_call.1']
    #allocation7 [shape = 'u8[4096]{0}', space=vmem, size = 0x1000, scoped, tag = 'output window, operand 0, single buffered']
    %7 = vsyncpa [#allocation3], 0
    %8 = vsyncpa [#allocation6], 0
    %9 = vsyncpa [#allocation4], 0
    // Predicated region
    $region2: #{tpu_custom_call.1} parent=1 // pred_check
      _
    $region3: #{tpu_custom_call.1} parent=1 // pred_check_branch
      %11 = sbr.rel (0) target = $region5
    $region4: #{tpu_custom_call.1} parent=1 // pred_region
      %s13 = ssub.s32 1280, 1280
      %14 = vsyncadd [#allocation3], %s13
      %s15 = sshll.u32 [#allocation2], 4
      %s16 = int_to_ptr.vmem [resolvable:$true] %s15
      %21 = dma.hbm_to_vmem [thread:$0]  %s0, 1280, %s16, [#allocation3], 128, 128, 8
    $region5: #{tpu_custom_call.1} parent=1 // pred_fallthru
      _
    // Predicated region
    $region6: #{tpu_custom_call.1} parent=1 // pred_check
      _
    $region7: #{tpu_custom_call.1} parent=1 // pred_check_branch
      %23 = sbr.rel (0) target = $region9
    $region8: #{tpu_custom_call.1} parent=1 // pred_region
      %s25 = ssub.s32 1280, 1280
      %26 = vsyncadd [#allocation6], %s25
      %s27 = sshll.u32 [#allocation5], 4
      %s28 = int_to_ptr.vmem [resolvable:$true] %s27
      %33 = dma.hbm_to_vmem [thread:$0]  %s1, 1280, %s28, [#allocation6], 128, 128, 8
    $region9: #{tpu_custom_call.1} parent=1 // pred_fallthru
      _
    // Predicated region
    $region10: #{tpu_custom_call.1} parent=1 // pred_check
      _
    $region11: #{tpu_custom_call.1} parent=1 // pred_check_branch
      %35 = sbr.rel (0) target = $region13
    $region12: #{tpu_custom_call.1} parent=1 // pred_region
      %36 = dma.done [#allocation3], 1280
    $region13: #{tpu_custom_call.1} parent=1 // pred_fallthru
      _
    // Predicated region
    $region14: #{tpu_custom_call.1} parent=1 // pred_check
      _
    $region15: #{tpu_custom_call.1} parent=1 // pred_check_branch
      %38 = sbr.rel (0) target = $region17
    $region16: #{tpu_custom_call.1} parent=1 // pred_region
      %39 = dma.done [#allocation6], 1280
    $region17: #{tpu_custom_call.1} parent=1 // pred_fallthru
      _
    %v40 = vld [vmem:[#allocation2] sm:$0xff]
    %v41 = vld [vmem:[#allocation2 + $0x8] sm:$0xff]
    %v42 = vld [vmem:[#allocation2 + $0x10] sm:$0xff]
    %v43 = vld [vmem:[#allocation2 + $0x18] sm:$0xff]
    %v44 = vld [vmem:[#allocation2 + $0x20] sm:$0xff]
    %v45 = vld [vmem:[#allocation2 + $0x28] sm:$0xff]
    %v46 = vld [vmem:[#allocation2 + $0x30] sm:$0xff]
    %v47 = vld [vmem:[#allocation2 + $0x38] sm:$0xff]
    %v48 = vld [vmem:[#allocation2 + $0x40] sm:$0xff]
    %v49 = vld [vmem:[#allocation2 + $0x48] sm:$0xff]
    %v50 = vld [vmem:[#allocation5] sm:$0xff]
    %v51 = vld [vmem:[#allocation5 + $0x8] sm:$0xff]
    %v52 = vld [vmem:[#allocation5 + $0x10] sm:$0xff]
    %v53 = vld [vmem:[#allocation5 + $0x18] sm:$0xff]
    %v54 = vld [vmem:[#allocation5 + $0x20] sm:$0xff]
    %v55 = vld [vmem:[#allocation5 + $0x28] sm:$0xff]
    %v56 = vld [vmem:[#allocation5 + $0x30] sm:$0xff]
    %v57 = vld [vmem:[#allocation5 + $0x38] sm:$0xff]
    %v58 = vld [vmem:[#allocation5 + $0x40] sm:$0xff]
    %v59 = vld [vmem:[#allocation5 + $0x48] sm:$0xff]
    %v60 = vsub.f32 %v40, %v50
    %v61 = vsub.f32 %v41, %v51
    %v62 = vsub.f32 %v42, %v52
    %v63 = vsub.f32 %v43, %v53
    %v64 = vsub.f32 %v44, %v54
    %v65 = vsub.f32 %v45, %v55
    %v66 = vsub.f32 %v46, %v56
    %v67 = vsub.f32 %v47, %v57
    %v68 = vsub.f32 %v48, %v58
    %v69 = vsub.f32 %v49, %v59
    %v70 = vmul.f32 %v60, %v60
    %v71 = vmul.f32 %v61, %v61
    %v72 = vmul.f32 %v62, %v62
    %v73 = vmul.f32 %v63, %v63
    %v74 = vmul.f32 %v64, %v64
    %v75 = vmul.f32 %v65, %v65
    %v76 = vmul.f32 %v66, %v66
    %v77 = vmul.f32 %v67, %v67
    %v78 = vmul.f32 %v68, %v68
    %v79 = vmul.f32 %v69, %v69
    %v80 = vadd.f32 %v70, %v71
    %v81 = vadd.f32 %v80, %v72
    %v82 = vadd.f32 %v81, %v73
    %v83 = vadd.f32 %v82, %v74
    %v84 = vadd.f32 %v83, %v75
    %v85 = vadd.f32 %v84, %v76
    %v86 = vadd.f32 %v85, %v77
    %v87 = vadd.f32 %v86, %v78
    %v88 = vadd.f32 %v87, %v79
    %v89 = vadd.f32 %v88, 0.0
    %90 = vst [vmem:[#allocation7] sm:$0xff] %v89
    // Predicated region
    $region18: #{tpu_custom_call.1} parent=1 // pred_check
      _
    $region19: #{tpu_custom_call.1} parent=1 // pred_check_branch
      %92 = sbr.rel (0) target = $region21
    $region20: #{tpu_custom_call.1} parent=1 // pred_region
      %s94 = ssub.s32 128, 128
      %95 = vsyncadd [#allocation4], %s94
      %s97 = sshll.u32 [#allocation7], 4
      %s98 = int_to_ptr.vmem [resolvable:$true] %s97
      %100 = dma.vmem_to_hbm [thread:$0]  %s98, 128, %s2, [#allocation4]
    $region21: #{tpu_custom_call.1} parent=1 // pred_fallthru
      _
    // Predicated region
    $region22: #{tpu_custom_call.1} parent=1 // pred_check
      _
    $region23: #{tpu_custom_call.1} parent=1 // pred_check_branch
      %102 = sbr.rel (0) target = $region25
    $region24: #{tpu_custom_call.1} parent=1 // pred_region
      %103 = dma.done [#allocation4], 128
    $region25: #{tpu_custom_call.1} parent=1 // pred_fallthru
      _
    %104 = vsyncpa [#allocation3], 1
    %105 = vsyncpa [#allocation6], 1
    %106 = vsyncpa [#allocation4], 1

</llo_original>
